<compile_context>
chip_gen: v7x
topology: tpu7x:2x2x1
jax: 0.10.0
libtpu: 0.0.40
codegen_flags: <defaults>
</compile_context>

<pallas_src>
import functools

import jax
import jax.numpy as jnp
from jax import lax
from jax.experimental import pallas as pl
from jax.experimental.pallas import tpu as pltpu

GAMMA = 1.5
ALPHA = 0.25
LANES = 128
MAX_TILE_ROWS = 4096     # 4096 x 128 x 4 B = 2 MiB per f32 input block


def _round_up(x, m):
    return (x + m - 1) // m * m


def _num_tc_splits():
    """2 parallel splits only on v7x (2 TensorCores/chip); 1 elsewhere.

    On single-TC parts a second split just serializes and (via the index_map clamp)
    re-DMAs the last block with a fully-masked contribution - pure wasted HBM traffic
    on a mem-bound kernel.
    """
    try:
        kind = jax.devices()[0].device_kind.lower()
    except Exception:
        return 1
    return 2 if "v7" in kind else 1


def _qfocal_kernel(pred_ref, true_ref, out_ref, acc_ref, *,
                   boundary_block, tail_rem, steps_per_split,
                   tile_rows, gamma, alpha):
    c = pl.program_id(0)          # parallel split (TensorCore) index
    i = pl.program_id(1)          # sequential step within the split
    step = c * steps_per_split + i

    @pl.when(i == 0)
    def _():
        acc_ref[...] = jnp.zeros_like(acc_ref)

    def compute(mask_fn):
        x = pred_ref[...].astype(jnp.float32)
        y = true_ref[...].astype(jnp.float32)

        # Share exp(-|x|) between BCE-with-logits and sigmoid (cuts EUP pushes).
        e = jnp.exp(-jnp.abs(x))
        bce = jnp.maximum(x, 0.0) - x * y + jnp.log1p(e)
        z = pl.reciprocal(1.0 + e, approx=True)      # sigmoid(|x|)
        p = jnp.where(x >= 0.0, z, 1.0 - z)          # sigmoid(x)
        alpha_factor = (1.0 - alpha) + y * (2.0 * alpha - 1.0)
        t = jnp.abs(y - p)
        if float(gamma) == 1.5:
            mod = t * jnp.sqrt(t)                    # t**1.5 without pow (= exp+log)
        else:
            mod = t ** gamma
        loss = mask_fn(bce * alpha_factor * mod)

        # Free reshape (does not cross (8,128) tiles); leading-axis sum is pure
        # vreg-to-vreg VPU adds.  Accumulator is a single (8,128) vreg-sized tile.
        acc_ref[...] += jnp.sum(loss.reshape(tile_rows // 8, 8, LANES), axis=0)

    # Hot path: blocks strictly before the valid-element boundary are fully valid.
    @pl.when(step < boundary_block)
    def _():
        compute(lambda l: l)

    # Cold path: the single partial block (ragged rows / lane padding).  Emitted only
    # when it exists (static).  Steps beyond it (clamped duplicates on the parallel
    # split) are skipped entirely.
    if tail_rem > 0:
        @pl.when(step == boundary_block)
        def _():
            def mask(l):
                row = lax.broadcasted_iota(jnp.int32, l.shape, 0)
                col = lax.broadcasted_iota(jnp.int32, l.shape, 1)
                return jnp.where(row * LANES + col < tail_rem, l, 0.0)
            compute(mask)

    @pl.when(i == pl.num_programs(1) - 1)
    def _():
        # Single cross-sublane/lane reduce per core, epilogue only (8x128 -> scalar).
        out_ref[0, 0] = jnp.sum(acc_ref[...])


def qfocal_loss(pred, true, gamma=GAMMA, alpha=ALPHA, reduction="mean"):
    """QFocalLoss forward.  pred/true: same shape (any rank).  Returns a scalar."""
    assert pred.shape == true.shape
    if reduction not in ("mean", "sum"):
        # TODO(synk): reduction='none' (full elementwise tensor output) not implemented.
        raise NotImplementedError(f"reduction={reduction!r} not supported")

    n_valid = int(pred.size)
    # Keep the original dtype (bf16 stays bf16 over HBM; the kernel upcasts per block).
    pred_flat = pred.reshape(-1)
    true_flat = true.reshape(-1)

    # Lane-align.  For the common case N % 128 == 0 this is a free reshape (no copy);
    # otherwise we pad by < 128 elements (padded elements are masked in-kernel).
    rem = n_valid % LANES
    if rem:
        pad = LANES - rem
        pred_flat = jnp.pad(pred_flat, (0, pad))
        true_flat = jnp.pad(true_flat, (0, pad))
    rows = pred_flat.shape[0] // LANES
    pred2d = pred_flat.reshape(rows, LANES)
    true2d = true_flat.reshape(rows, LANES)

    tile_rows = min(MAX_TILE_ROWS, _round_up(rows, 8))
    block_elems = tile_rows * LANES
    blocks = pl.cdiv(rows, tile_rows)               # row-blocks (last may be ragged)

    num_splits = _num_tc_splits()
    steps_per_split = pl.cdiv(blocks, num_splits)
    grid = (num_splits, steps_per_split)

    # Static (Python-int) boundary: blocks < boundary_block are fully valid,
    # block == boundary_block holds tail_rem valid elements (if any).
    boundary_block = n_valid // block_elems
    tail_rem = n_valid - boundary_block * block_elems

    def in_index_map(c, i):
        # Clamp so out-of-range steps re-read the last valid block (their contribution
        # is skipped inside the kernel), keeping every DMA in bounds.
        return (jnp.minimum(c * steps_per_split + i, blocks - 1), 0)

    kernel = functools.partial(
        _qfocal_kernel,
        boundary_block=boundary_block,
        tail_rem=tail_rem,
        steps_per_split=steps_per_split,
        tile_rows=tile_rows,
        gamma=gamma,
        alpha=alpha,
    )

    in_bytes = (pred2d.size * pred2d.dtype.itemsize
                + true2d.size * true2d.dtype.itemsize)
    cost = pl.CostEstimate(
        flops=12 * n_valid,
        transcendentals=4 * n_valid,          # exp, log1p, rcp, sqrt per element
        bytes_accessed=in_bytes + 4 * num_splits,
    )

    # TODO(synk): on v7x, verify in xprof that both TensorCores run; if plain
    # "parallel" does not shard the leading axis, switch it to pltpu.CORE_PARALLEL.
    partials = pl.pallas_call(
        kernel,
        out_shape=jax.ShapeDtypeStruct((num_splits, 1), jnp.float32),
        grid_spec=pltpu.PrefetchScalarGridSpec(
            num_scalar_prefetch=0,
            grid=grid,
            in_specs=[
                pl.BlockSpec((tile_rows, LANES), in_index_map),
                pl.BlockSpec((tile_rows, LANES), in_index_map),
            ],
            out_specs=pl.BlockSpec(
                (1, 1), lambda c, i: (c, 0), memory_space=pltpu.SMEM
            ),
            scratch_shapes=[pltpu.VMEM((8, LANES), jnp.float32)],
        ),
        compiler_params=pltpu.CompilerParams(
            dimension_semantics=("parallel", "arbitrary"),
        ),
        cost_estimate=cost,
    )(pred2d, true2d)

    total = jnp.sum(partials)
    if reduction == "mean":
        total = total / jnp.float32(n_valid)
    return total


def qfocal_loss_ref(pred, true, gamma=GAMMA, alpha=ALPHA):
    # Pure-JAX reference (exact sigmoid / pow) for sanity checking.
    x = pred.astype(jnp.float32)
    y = true.astype(jnp.float32)
    bce = jnp.maximum(x, 0.0) - x * y + jnp.log1p(jnp.exp(-jnp.abs(x)))
    p = jax.nn.sigmoid(x)
    af = y * alpha + (1.0 - y) * (1.0 - alpha)
    mod = jnp.abs(y - p) ** gamma
    return jnp.mean(bce * af * mod)


if __name__ == "__main__":
    key = jax.random.PRNGKey(0)
    k1, k2 = jax.random.split(key)
    # NCHW logits and soft targets in [0,1], as in quality focal loss.
    pred = jax.random.normal(k1, (2, 4, 16, 16), dtype=jnp.float32)
    true = jax.random.uniform(k2, (2, 4, 16, 16), dtype=jnp.float32)

    out = qfocal_loss(pred, true)
    out = jax.block_until_ready(out)

    ref = qfocal_loss_ref(pred, true)
    # Tolerance relaxed slightly vs. the exact reference: the kernel's sigmoid uses the
    # EUP approximate reciprocal (pl.reciprocal(..., approx=True)), ~1e-4 rel. error.
    assert jnp.allclose(out, ref, rtol=5e-3, atol=1e-6), (out, ref)

    # Also exercise a ragged / non-lane-aligned shape to cover the tail-mask path.
    k3, k4 = jax.random.split(k2)
    pred_r = jax.random.normal(k3, (3, 5, 7, 11), dtype=jnp.float32)
    true_r = jax.random.uniform(k4, (3, 5, 7, 11), dtype=jnp.float32)
    out_r = jax.block_until_ready(qfocal_loss(pred_r, true_r))
    ref_r = qfocal_loss_ref(pred_r, true_r)
    assert jnp.allclose(out_r, ref_r, rtol=5e-3, atol=1e-6), (out_r, ref_r)

    print("KERNEL_OK")
</pallas_src>

<mosaic_0001>
module attributes {stable_mosaic.version = 11 : i64} {
  func.func @_qfocal_kernel(%arg0: i32, %arg1: i32, %arg2: memref<16x128xf32, #tpu.memory_space<vmem>>, %arg3: memref<16x128xf32, #tpu.memory_space<vmem>>, %arg4: memref<1x1xf32, #tpu.memory_space<smem>>, %arg5: memref<8x128xf32, #tpu.memory_space<vmem>>) attributes {dimension_semantics = [#tpu.dimension_semantics<parallel>, #tpu.dimension_semantics<arbitrary>], iteration_bounds = array<i64: 1, 1>, scalar_prefetch = 0 : i64, scratch_operands = 1 : i64, tpu.core_type = #tpu.core_type<tc>, window_params = [{transform_indices = @transform_0, window_bounds = array<i64: 16, 128>}, {transform_indices = @transform_1, window_bounds = array<i64: 16, 128>}, {transform_indices = @transform_2, window_bounds = array<i64: 1, 1>}]} {
    %c1_i32 = arith.constant 1 : i32
    %0 = arith.muli %arg0, %c1_i32 : i32
    %1 = arith.addi %0, %arg1 : i32
    %c0_i32 = arith.constant 0 : i32
    %2 = arith.cmpi eq, %arg1, %c0_i32 : i32
    %3 = arith.extui %2 : i1 to i32
    %c0_i32_0 = arith.constant 0 : i32
    %4 = arith.cmpi ne, %3, %c0_i32_0 : i32
    scf.if %4 {
      %cst = arith.constant 0.000000e+00 : f32
      %11 = vector.broadcast %cst : f32 to vector<8x128xf32>
      %c0 = arith.constant 0 : index
      %c0_5 = arith.constant 0 : index
      %12 = vector.load %arg5[%c0, %c0_5] : memref<8x128xf32, #tpu.memory_space<vmem>>, vector<8x128xf32>
      tpu.vector_store %arg5[%c0, %c0_5], %11 {strides = array<i32>} : memref<8x128xf32, #tpu.memory_space<vmem>>, vector<8x128xf32>,
    } else {
    }
    %c1_i32_1 = arith.constant 1 : i32
    %5 = arith.cmpi slt, %1, %c1_i32_1 : i32
    %6 = arith.extui %5 : i1 to i32
    %c0_i32_2 = arith.constant 0 : i32
    %7 = arith.cmpi ne, %6, %c0_i32_2 : i32
    scf.if %7 {
      %c0 = arith.constant 0 : index
      %c0_5 = arith.constant 0 : index
      %11 = vector.load %arg2[%c0, %c0_5] : memref<16x128xf32, #tpu.memory_space<vmem>>, vector<16x128xf32>
      %c0_6 = arith.constant 0 : index
      %c0_7 = arith.constant 0 : index
      %12 = vector.load %arg3[%c0_6, %c0_7] : memref<16x128xf32, #tpu.memory_space<vmem>>, vector<16x128xf32>
      %13 = math.absf %11 : vector<16x128xf32>
      %cst = arith.constant 0.000000e+00 : f32
      %14 = vector.broadcast %cst : f32 to vector<16x128xf32>
      %15 = arith.subf %14, %13 : vector<16x128xf32>
      %16 = math.exp %15 : vector<16x128xf32>
      %cst_8 = arith.constant 0.000000e+00 : f32
      %17 = vector.broadcast %cst_8 : f32 to vector<16x128xf32>
      %18 = arith.maximumf %11, %17 : vector<16x128xf32>
      %19 = arith.mulf %11, %12 : vector<16x128xf32>
      %20 = arith.subf %18, %19 : vector<16x128xf32>
      %21 = math.log1p %16 : vector<16x128xf32>
      %22 = arith.addf %20, %21 : vector<16x128xf32>
      %cst_9 = arith.constant 1.000000e+00 : f32
      %23 = vector.broadcast %cst_9 : f32 to vector<16x128xf32>
      %24 = arith.addf %23, %16 : vector<16x128xf32>
      %25 = tpu.reciprocal %24 {approx = true} : vector<16x128xf32> -> vector<16x128xf32>
      %cst_10 = arith.constant 0.000000e+00 : f32
      %26 = vector.broadcast %cst_10 : f32 to vector<16x128xf32>
      %27 = arith.cmpf oge, %11, %26 : vector<16x128xf32>
      %cst_11 = arith.constant 1.000000e+00 : f32
      %28 = vector.broadcast %cst_11 : f32 to vector<16x128xf32>
      %29 = arith.subf %28, %25 : vector<16x128xf32>
      %30 = arith.select %27, %25, %29 : vector<16x128xi1>, vector<16x128xf32>
      %cst_12 = arith.constant -5.000000e-01 : f32
      %31 = vector.broadcast %cst_12 : f32 to vector<16x128xf32>
      %32 = arith.mulf %12, %31 : vector<16x128xf32>
      %cst_13 = arith.constant 7.500000e-01 : f32
      %33 = vector.broadcast %cst_13 : f32 to vector<16x128xf32>
      %34 = arith.addf %33, %32 : vector<16x128xf32>
      %35 = arith.subf %12, %30 : vector<16x128xf32>
      %36 = math.absf %35 : vector<16x128xf32>
      %37 = math.sqrt %36 : vector<16x128xf32>
      %38 = arith.mulf %36, %37 : vector<16x128xf32>
      %39 = arith.mulf %22, %34 : vector<16x128xf32>
      %40 = arith.mulf %39, %38 : vector<16x128xf32>
      %c0_14 = arith.constant 0 : index
      %c0_15 = arith.constant 0 : index
      %41 = vector.load %arg5[%c0_14, %c0_15] : memref<8x128xf32, #tpu.memory_space<vmem>>, vector<8x128xf32>
      %42 = vector.shape_cast %40 : vector<16x128xf32> to vector<2x8x128xf32>
      %cst_16 = arith.constant dense<0.000000e+00> : vector<8x128xf32>
      %43 = vector.multi_reduction <add>, %42, %cst_16 [0] : vector<2x8x128xf32> to vector<8x128xf32>
      %44 = arith.addf %41, %43 : vector<8x128xf32>
      %c0_17 = arith.constant 0 : index
      %c0_18 = arith.constant 0 : index
      %45 = vector.load %arg5[%c0_17, %c0_18] : memref<8x128xf32, #tpu.memory_space<vmem>>, vector<8x128xf32>
      tpu.vector_store %arg5[%c0_17, %c0_18], %44 {strides = array<i32>} : memref<8x128xf32, #tpu.memory_space<vmem>>, vector<8x128xf32>,
    } else {
    }
    %c0_i32_3 = arith.constant 0 : i32
    %8 = arith.cmpi eq, %arg1, %c0_i32_3 : i32
    %9 = arith.extui %8 : i1 to i32
    %c0_i32_4 = arith.constant 0 : i32
    %10 = arith.cmpi ne, %9, %c0_i32_4 : i32
    scf.if %10 {
      %c0 = arith.constant 0 : index
      %c0_5 = arith.constant 0 : index
      %11 = vector.load %arg5[%c0, %c0_5] : memref<8x128xf32, #tpu.memory_space<vmem>>, vector<8x128xf32>
      %12 = vector.shape_cast %11 : vector<8x128xf32> to vector<1x8x128xf32>
      %cst = arith.constant dense<0.000000e+00> : vector<1xf32>
      %13 = vector.multi_reduction <add>, %12, %cst [1, 2] : vector<1x8x128xf32> to vector<1xf32>
      %14 = vector.shape_cast %13 : vector<1xf32> to vector<1x1x1xf32>
      %15 = vector.extract %14[0, 0, 0] : f32 from vector<1x1x1xf32>
      %c0_6 = arith.constant 0 : index
      %c0_7 = arith.constant 0 : index
      %16 = memref.load %arg4[%c0_6, %c0_7] : memref<1x1xf32, #tpu.memory_space<smem>>
      memref.store %15, %arg4[%c0_6, %c0_7] : memref<1x1xf32, #tpu.memory_space<smem>>
    } else {
    }
    return
  }
  func.func @transform_0(%arg0: i32, %arg1: i32) -> (i32, i32) {
    %c1_i32 = arith.constant 1 : i32
    %0 = arith.muli %arg0, %c1_i32 : i32
    %1 = arith.addi %0, %arg1 : i32
    %c0_i32 = arith.constant 0 : i32
    %2 = arith.minsi %1, %c0_i32 : i32
    %c0_i32_0 = arith.constant 0 : i32
    %c0_i32_1 = arith.constant 0 : i32
    return %2, %c0_i32_0 : i32, i32
  }
  func.func @transform_1(%arg0: i32, %arg1: i32) -> (i32, i32) {
    %c1_i32 = arith.constant 1 : i32
    %0 = arith.muli %arg0, %c1_i32 : i32
    %1 = arith.addi %0, %arg1 : i32
    %c0_i32 = arith.constant 0 : i32
    %2 = arith.minsi %1, %c0_i32 : i32
    %c0_i32_0 = arith.constant 0 : i32
    %c0_i32_1 = arith.constant 0 : i32
    return %2, %c0_i32_0 : i32, i32
  }
  func.func @transform_2(%arg0: i32, %arg1: i32) -> (i32, i32) {
    %c0_i32 = arith.constant 0 : i32
    %c0_i32_0 = arith.constant 0 : i32
    return %arg0, %c0_i32 : i32, i32
  }
}

</mosaic_0001>

<llo_original>
// kernel: tpu_custom_call.1
$region0: #{tpu_custom_call.1}
  #allocation0 [shape = 'u32[]', space=smem, size = 0x4, offset = 0x4, fixed_abs, tag = 'smem constant byte address 0x4 - core index']
  #allocation1 [shape = 'u32[144,128]{1,0:T(1,128)}', space=vmem, size = 0x12000, scoped, tag = 'internal scratch']
  #allocation2 [shape = 'f32[8,128]{1,0:T(8,128)}', space=vmem, size = 0x1000, scoped, tag = 'scratch operand']
  %s0 = inlined_call_operand.hbm [shape: f32[16,128], index: 0, kind: input, shape index: {}]
  %s1 = inlined_call_operand.hbm [shape: f32[16,128], index: 1, kind: input, shape index: {}]
  %s2 = inlined_call_operand.hbm [shape: f32[1,1], index: 2, kind: output, shape index: {}]
  %s3 = sld [smem:[#allocation0]]
  $region38: #{tpu_custom_call.1} parent=0
    _
  %s5 = ssub.s32 1, %s3
  %s6 = scalar_select 0, %s5, %s3
  $region1: #{tpu_custom_call.1} parent=0
    #allocation3 [shape = 'u8[8192]{0}', space=vmem, size = 0x2000, scoped, tag = 'input window, operand 0, single buffered']
    #allocation4 [shape = 's32[1]{0}', space=sflag, size = 0x4, scoped, tag = 'scoped memory for tpu_custom_call.1']
    #allocation5 [shape = 's32[1]{0}', space=sflag, size = 0x4, scoped, tag = 'scoped memory for tpu_custom_call.1']
    #allocation6 [shape = 'u8[8192]{0}', space=vmem, size = 0x2000, scoped, tag = 'input window, operand 1, single buffered']
    #allocation7 [shape = 's32[1]{0}', space=sflag, size = 0x4, scoped, tag = 'scoped memory for tpu_custom_call.1']
    #allocation8 [shape = 'u8[512]{0}', space=smem, size = 0x200, scoped, tag = 'output window, operand 0, single buffered']
    %7 = vsyncpa [#allocation4], 0
    %8 = vsyncpa [#allocation7], 0
    %9 = vsyncpa [#allocation5], 0
    // Predicated region
    $region2: #{tpu_custom_call.1} parent=1 // pred_check
      _
    $region3: #{tpu_custom_call.1} parent=1 // pred_check_branch
      %11 = sbr.rel (0) target = $region5
    $region4: #{tpu_custom_call.1} parent=1 // pred_region
      %s12 = sadd.s32 0, 0
      %p13 = scmp.lt.s32.totalorder %s12, 0
      %s14 = scalar_select %p13, %s12, 0
      %s15 = smul.u32 2, %s14
      %s17 = ssub.s32 256, 256
      %18 = vsyncadd [#allocation4], %s17
      %s19 = smul.addr %s15, 128
      %s20 = scalar_lea.hbm %s0, %s19
      %s21 = sshll.u32 [#allocation3], 4
      %s22 = int_to_ptr.vmem [resolvable:$true] %s21
      %27 = dma.hbm_to_vmem [thread:$0]  %s20, 256, %s22, [#allocation4], 128, 128, 8
    $region5: #{tpu_custom_call.1} parent=1 // pred_fallthru
      _
    // Predicated region
    $region6: #{tpu_custom_call.1} parent=1 // pred_check
      _
    $region7: #{tpu_custom_call.1} parent=1 // pred_check_branch
      %29 = sbr.rel (0) target = $region9
    $region8: #{tpu_custom_call.1} parent=1 // pred_region
      %s30 = sadd.s32 0, 0
      %p31 = scmp.lt.s32.totalorder %s30, 0
      %s32 = scalar_select %p31, %s30, 0
      %s33 = smul.u32 2, %s32
      %s35 = ssub.s32 256, 256
      %36 = vsyncadd [#allocation7], %s35
      %s37 = smul.addr %s33, 128
      %s38 = scalar_lea.hbm %s1, %s37
      %s39 = sshll.u32 [#allocation6], 4
      %s40 = int_to_ptr.vmem [resolvable:$true] %s39
      %45 = dma.hbm_to_vmem [thread:$0]  %s38, 256, %s40, [#allocation7], 128, 128, 8
    $region9: #{tpu_custom_call.1} parent=1 // pred_fallthru
      _
    // Predicated region
    $region10: #{tpu_custom_call.1} parent=1 // pred_check
      _
    $region11: #{tpu_custom_call.1} parent=1 // pred_check_branch
      %47 = sbr.rel (0) target = $region13
    $region12: #{tpu_custom_call.1} parent=1 // pred_region
      %48 = dma.done [#allocation4], 256
    $region13: #{tpu_custom_call.1} parent=1 // pred_fallthru
      _
    // Predicated region
    $region14: #{tpu_custom_call.1} parent=1 // pred_check
      _
    $region15: #{tpu_custom_call.1} parent=1 // pred_check_branch
      %50 = sbr.rel (0) target = $region17
    $region16: #{tpu_custom_call.1} parent=1 // pred_region
      %51 = dma.done [#allocation7], 256
    $region17: #{tpu_custom_call.1} parent=1 // pred_fallthru
      _
    %s52 = sadd.s32 0, 0
    %p53 = scmp.lt.s32.totalorder %s52, 0
    %s54 = scalar_select %p53, %s52, 0
    %s55 = smul.u32 2, %s54
    %s56 = sadd.s32 0, 0
    %p57 = scmp.lt.s32.totalorder %s56, 0
    %s58 = scalar_select %p57, %s56, 0
    %s59 = smul.u32 2, %s58
    %s60 = sadd.s32 0, 0
    %p61 = scmp.eq.s32.totalorder 0, 0
    // Predicated region
    $region18: #{tpu_custom_call.1} parent=1 // pred_check
      %p62 = pneg %p61
    $region19: #{tpu_custom_call.1} parent=1 // pred_check_branch
      %64 = sbr.rel (%p62) target = $region21
    $region20: #{tpu_custom_call.1} parent=1 // pred_region
      %65 = vst [vmem:[#allocation2] sm:$0xff] 0.0
    $region21: #{tpu_custom_call.1} parent=1 // pred_fallthru
      _
    %p66 = scmp.lt.s32.totalorder %s60, 1
    // Predicated region
    $region22: #{tpu_custom_call.1} parent=1 // pred_check
      %p67 = pneg %p66
    $region23: #{tpu_custom_call.1} parent=1 // pred_check_branch
      %69 = sbr.rel (%p67) target = $region25
    $region24: #{tpu_custom_call.1} parent=1 // pred_region
      %v70 = vld [vmem:[#allocation3] sm:$0xff]
      %v71 = vld [vmem:[#allocation3 + $0x8] sm:$0xff]
      %v72 = vld [vmem:[#allocation6] sm:$0xff]
      %v73 = vld [vmem:[#allocation6 + $0x8] sm:$0xff]
      %v74 = vand.u32 2147483647, %v70
      %v75 = vand.u32 2147483647, %v71
      %v76 = vsub.f32 0.0, %v74
      %v77 = vsub.f32 0.0, %v75
      %v78 = vmul.f32 %v76, 1.442695
      %v79 = vpow.pop %v78
      %v80 = vmul.f32 %v77, 1.442695
      %v81 = vpow.pop %v80
      %v82 = vmax.f32 %v70, 0.0
      %v83 = vmax.f32 %v71, 0.0
      %v84 = vmul.f32 %v70, %v72
      %v85 = vmul.f32 %v71, %v73
      %v86 = vsub.f32 %v82, %v84
      %v87 = vsub.f32 %v83, %v85
      %v88 = vadd.f32 %v79, 1.0
      %v89 = vlog2.pop %v88
      %v90 = vmul.f32 %v89, 0.6931472
      %v91 = vmul.f32 -0.5, %v79
      %v92 = vadd.f32 %v91, 1.0
      %v93 = vmul.f32 %v92, %v79
      %v94 = vand.u32 2147483647, %v79
      %vm95 = vcmp.lt.f32.partialorder %v94, 0.0004427343
      %v96 = vsel %vm95, %v93, %v90
      %v97 = vadd.f32 %v81, 1.0
      %v98 = vlog2.pop %v97
      %v99 = vmul.f32 %v98, 0.6931472
      %v100 = vmul.f32 -0.5, %v81
      %v101 = vadd.f32 %v100, 1.0
      %v102 = vmul.f32 %v101, %v81
      %v103 = vand.u32 2147483647, %v81
      %vm104 = vcmp.lt.f32.partialorder %v103, 0.0004427343
      %v105 = vsel %vm104, %v102, %v99
      %v106 = vadd.f32 %v86, %v96
      %v107 = vadd.f32 %v87, %v105
      %v108 = vadd.f32 %v79, 1.0
      %v109 = vadd.f32 %v81, 1.0
      %v110 = vrcp.pop %v108
      %v111 = vrcp.pop %v109
      %vm112 = vcmp.ge.f32.partialorder %v70, 0.0
      %vm113 = vcmp.ge.f32.partialorder %v71, 0.0
      %v114 = vsub.f32 1.0, %v110
      %v115 = vsub.f32 1.0, %v111
      %v116 = vsel %vm112, %v110, %v114
      %v117 = vsel %vm113, %v111, %v115
      %v118 = vmul.f32 %v72, -0.5
      %v119 = vmul.f32 %v73, -0.5
      %v120 = vadd.f32 %v118, 0.75
      %v121 = vadd.f32 %v119, 0.75
      %v122 = vsub.f32 %v72, %v116
      %v123 = vsub.f32 %v73, %v117
      %v124 = vand.u32 2147483647, %v122
      %v125 = vand.u32 2147483647, %v123
      %v126 = vrsqrt.pop %v124
      %v127 = vmul.f32 %v124, %v126
      %vm128 = vcmp.eq.f32.partialorder %v124, inf
      %v129 = vsel %vm128, %v124, %v127
      %vm130 = vcmp.eq.f32.partialorder %v124, 0.0
      %v131 = vand.u32 %v124, 2147483648
      %v132 = vsel %vm130, %v131, %v129
      %v133 = vrsqrt.pop %v125
      %v134 = vmul.f32 %v125, %v133
      %vm135 = vcmp.eq.f32.partialorder %v125, inf
      %v136 = vsel %vm135, %v125, %v134
      %vm137 = vcmp.eq.f32.partialorder %v125, 0.0
      %v138 = vand.u32 %v125, 2147483648
      %v139 = vsel %vm137, %v138, %v136
      %v140 = vmul.f32 %v124, %v132
      %v141 = vmul.f32 %v125, %v139
      %v142 = vmul.f32 %v106, %v120
      %v143 = vmul.f32 %v107, %v121
      %v144 = vmul.f32 %v142, %v140
      %v145 = vmul.f32 %v143, %v141
      %v146 = vld [vmem:[#allocation2] sm:$0xff]
      %v147 = vadd.f32 %v144, %v145
      %v148 = vadd.f32 %v146, %v147
      %149 = vst [vmem:[#allocation2] sm:$0xff] %v148
    $region25: #{tpu_custom_call.1} parent=1 // pred_fallthru
      _
    // Predicated region
    $region26: #{tpu_custom_call.1} parent=1 // pred_check
      %p150 = pneg %p61
    $region27: #{tpu_custom_call.1} parent=1 // pred_check_branch
      %152 = sbr.rel (%p150) target = $region29
    $region28: #{tpu_custom_call.1} parent=1 // pred_region
      %v153 = vld [vmem:[#allocation2] sm:$0xff]
      %154 = vadd.xlane.f32.xlu0 %v153
      %v155 = vpop.xlane.xlu0 %154
      %v156 = vrot.slane %v155, 4
      %v157 = vadd.f32 %v155, %v156
      %v158 = vrot.slane %v157, 2
      %v159 = vadd.f32 %v157, %v158
      %v160 = vrot.slane %v159, 1
      %v161 = vadd.f32 %v159, %v160
      %s162 = vtos %v161
      %s163 = scalar_lea.smem [#allocation8], 0
      %164 = sst [smem:[%s163]] %s162
    $region29: #{tpu_custom_call.1} parent=1 // pred_fallthru
      _
    // Predicated region
    $region30: #{tpu_custom_call.1} parent=1 // pred_check
      _
    $region31: #{tpu_custom_call.1} parent=1 // pred_check_branch
      %166 = sbr.rel (0) target = $region33
    $region32: #{tpu_custom_call.1} parent=1 // pred_region
      %s168 = ssub.s32 16, 16
      %169 = vsyncadd [#allocation5], %s168
      %172 = dma.smem_to_hbm [#allocation8], 16, %s2, [#allocation5]
    $region33: #{tpu_custom_call.1} parent=1 // pred_fallthru
      _
    // Predicated region
    $region34: #{tpu_custom_call.1} parent=1 // pred_check
      _
    $region35: #{tpu_custom_call.1} parent=1 // pred_check_branch
      %174 = sbr.rel (0) target = $region37
    $region36: #{tpu_custom_call.1} parent=1 // pred_region
      %175 = dma.done [#allocation5], 16
    $region37: #{tpu_custom_call.1} parent=1 // pred_fallthru
      _
    %176 = sfence
    %177 = vsyncpa [#allocation4], 1
    %178 = vsyncpa [#allocation7], 1
    %179 = vsyncpa [#allocation5], 1

</llo_original>
